<compile_context>
chip_gen: v7x
topology: tpu7x:2x2x1
jax: 0.10.0
libtpu: 0.0.40
codegen_flags: <defaults>
</compile_context>

<pallas_src>
import math

import jax
import jax.numpy as jnp
from jax.experimental import pallas as pl
from jax.experimental.pallas import tpu as pltpu


def _affine_placer_kernel(aff_ref, grid_ref, planes_ref, img_ref, out_ref):
    """One grid step: warp the stacked sticker/mask planes for `nb` images on one K-tile.

    aff_ref:    (N*6,)        flat f32 affine coefficients in SMEM
    grid_ref:   (2, kt)       normalized output coords for this K-tile (resident per tile)
    planes_ref: (2*C*Hp, Wp)  stacked [sticker(C); mask(C)] padded planes, f32, resident
    img_ref:    (nb, C, kt)   image block (input dtype)
    out_ref:    (nb, C, kt)   output block (input dtype)
    """
    nb, C, Kt = img_ref.shape
    two_c_hp, Wp = planes_ref.shape
    Hp = two_c_hp // (2 * C)
    i = pl.program_id(0)

    # Per-K-tile constants, hoisted out of the per-image loop.
    xn = grid_ref[0:1, :]                                             # (1, kt)
    yn = grid_ref[1:2, :]                                             # (1, kt)
    qf = jax.lax.broadcasted_iota(jnp.int32, (Wp, Kt), 0).astype(jnp.float32)
    pf = jax.lax.broadcasted_iota(jnp.int32, (Hp, Kt), 0).astype(jnp.float32)
    planes = planes_ref[...]                                          # (2*C*Hp, Wp)

    def body(b, carry):
        off = (i * nb + b) * 6
        a00 = aff_ref[off + 0]
        a01 = aff_ref[off + 1]
        a02 = aff_ref[off + 2]
        a10 = aff_ref[off + 3]
        a11 = aff_ref[off + 4]
        a12 = aff_ref[off + 5]

        # F.affine_grid: normalized source coords; then grid_sample unnormalization
        # (align_corners=False).
        xs = a00 * xn + a01 * yn + a02
        ys = a10 * xn + a11 * yn + a12
        px = (xs + 1.0) * (Wp * 0.5) - 0.5                            # source x (pixels)
        py = (ys + 1.0) * (Hp * 0.5) - 0.5                            # source y (pixels)

        # Tent-function bilinear weights (exactly the 2-hot corner weights; out-of-range
        # source indices never get weight == padding_mode='zeros').
        sxT = jnp.maximum(1.0 - jnp.abs(qf - px), 0.0)                # (Wp, kt)
        syT = jnp.maximum(1.0 - jnp.abs(pf - py), 0.0)                # (Hp, kt)

        # ONE stacked MXU matmul for all channels of sticker AND mask (default precision:
        # bf16 operands, f32 accumulate).
        acc = jnp.dot(planes, sxT, preferred_element_type=jnp.float32)  # (2*C*Hp, kt)
        acc = acc.reshape(2, C, Hp, Kt)
        warped = jnp.sum(acc * syT[None, None, :, :], axis=2)           # (2, C, kt)
        w_st = warped[0]                                                 # (C, kt)
        w_mk = warped[1]                                                 # (C, kt)

        # composite: warped_sticker + image * (1 - warped_mask) -- one (C, kt) store.
        img = img_ref[b].astype(jnp.float32)                             # (C, kt)
        out_ref[b] = (w_st + img * (1.0 - w_mk)).astype(out_ref.dtype)
        return carry

    # TODO(synk): for large images, bound the source window per K-tile (scalar math on the
    # affine coeffs) and slice planes with pl.ds before the matmul to skip all-zero columns.
    jax.lax.fori_loop(0, nb, body, 0, unroll=True)


def _pad_to_target(arr, target_hw):
    """Centered zero pad, identical to the module's nn.ConstantPad3d setup."""
    _, Hm, Wm = arr.shape
    Ht, Wt = target_hw
    x = (Wt - Wm) // 2
    y = Wt - (x + Wm)
    z = (Ht - Hm) // 2
    w = Ht - (z + Hm)
    return jnp.pad(arr, ((0, 0), (z, w), (x, y)))


def _pick_nb(N):
    """Images per grid step: keep >=2 grid steps (megacore) when possible, cap at 8."""
    best = 1
    for nb in range(1, min(N, 8) + 1):
        if N % nb == 0 and (N // nb >= 2 or N == 1):
            best = nb
    return best


def _pick_kt(K_pad):
    """Largest multiple-of-128 divisor of K_pad, capped at 2048 lanes per tile."""
    best = None
    for kt in range(128, min(K_pad, 2048) + 1, 128):
        if K_pad % kt == 0:
            best = kt
    return best if best is not None else K_pad


def sample_affine_params(key, batch_size, max_rotation, max_translation, scale_range):
    """samples.random_(0,1000) -> S = samples @ boundaries^T + offsets -> 2x3 affine.

    Returns (N, 6) rows = (a00, a01, a02, a10, a11, a12).
    """
    # TODO(synk): forward's optional fixed-`scale` override (scale != None) is not
    # implemented; only the default random-scale path of __setAff__ is supported.
    samples = jax.random.randint(key, (batch_size, 4), 0, 1000).astype(jnp.float32)
    theta = samples[:, 0] * (math.pi * max_rotation / 90.0 / 1000.0) \
        - math.pi * max_rotation / 180.0
    scale = samples[:, 1] * ((scale_range[1] - scale_range[0]) / 1000.0) + scale_range[0]
    tx = samples[:, 2] * (2.0 * max_translation / 1000.0) - max_translation
    ty = samples[:, 3] * (2.0 * max_translation / 1000.0) - max_translation
    cos_s = jnp.cos(theta) / scale
    sin_s = jnp.sin(theta) / scale
    return jnp.stack([cos_s, sin_s, tx, -sin_s, cos_s, ty], axis=1)


def affine_placer_forward(images, sticker, mask, aff, *, nb=None, kt=None):
    """Pallas forward: warp padded sticker/mask with per-batch affines and composite."""
    N, C, H, W = images.shape
    assert sticker.shape == mask.shape and sticker.shape[0] == C
    pad_sticker = _pad_to_target(sticker.astype(jnp.float32), (H, W))
    pad_mask = _pad_to_target(mask.astype(jnp.float32), (H, W))
    Hp, Wp = pad_sticker.shape[1:]

    K = H * W
    K_pad = ((K + 127) // 128) * 128            # keep the lane axis dense

    if nb is None:
        nb = _pick_nb(N)
    if kt is None:
        kt = _pick_kt(K_pad)
    assert N % nb == 0 and K_pad % kt == 0

    # Constant normalized output-pixel-center coords (align_corners=False), flattened
    # row-major so spatial is the lane axis inside the kernel.
    jx = (2.0 * jnp.arange(W, dtype=jnp.float32) + 1.0) / W - 1.0
    iy = (2.0 * jnp.arange(H, dtype=jnp.float32) + 1.0) / H - 1.0
    yv, xv = jnp.meshgrid(iy, jx, indexing="ij")                        # (H, W)
    base_grid = jnp.stack([xv.reshape(-1), yv.reshape(-1)], axis=0)     # (2, K)
    if K_pad != K:
        base_grid = jnp.pad(base_grid, ((0, 0), (0, K_pad - K)))

    # Stack sticker + mask planes for all channels into one MXU operand.
    planes = jnp.concatenate([pad_sticker, pad_mask], axis=0).reshape(2 * C * Hp, Wp)

    images_flat = images.reshape(N, C, K)
    if K_pad != K:
        images_flat = jnp.pad(images_flat, ((0, 0), (0, 0), (0, K_pad - K)))

    aff_flat = aff.astype(jnp.float32).reshape(N * 6)                   # 1-D: no SMEM 2-D padding

    # TODO(synk): on v7x verify both TensorCores are busy; switch the batch axis to
    # pltpu.CORE_PARALLEL if xprof shows an idle core.
    out_flat = pl.pallas_call(
        _affine_placer_kernel,
        out_shape=jax.ShapeDtypeStruct((N, C, K_pad), images.dtype),
        grid=(N // nb, K_pad // kt),
        in_specs=[
            pl.BlockSpec(memory_space=pltpu.MemorySpace.SMEM),          # aff (N*6,) flat
            pl.BlockSpec((2, kt), lambda i, j: (0, j)),                 # base grid K-tile
            pl.BlockSpec((2 * C * Hp, Wp), lambda i, j: (0, 0)),        # stacked planes (resident)
            pl.BlockSpec((nb, C, kt), lambda i, j: (i, 0, j)),          # image block
        ],
        out_specs=pl.BlockSpec((nb, C, kt), lambda i, j: (i, 0, j)),
        compiler_params=pltpu.CompilerParams(
            dimension_semantics=("parallel", "parallel"),
            vmem_limit_bytes=48 * 1024 * 1024,                          # < physical on all chips
        ),
    )(aff_flat, base_grid, planes, images_flat)

    return out_flat[:, :, :K].reshape(N, C, H, W)


# ----------------------------- pure-JAX reference -----------------------------

def _grid_sample_bilinear_zeros(img, px, py):
    """Gather-based bilinear grid sample with zeros padding (reference only)."""
    C, H, W = img.shape
    x0 = jnp.floor(px).astype(jnp.int32)
    y0 = jnp.floor(py).astype(jnp.int32)
    fx = px - x0.astype(jnp.float32)
    fy = py - y0.astype(jnp.float32)

    def tap(yy, xx):
        valid = ((xx >= 0) & (xx < W) & (yy >= 0) & (yy < H)).astype(jnp.float32)
        v = img[:, jnp.clip(yy, 0, H - 1), jnp.clip(xx, 0, W - 1)]
        return v * valid[None]

    return (tap(y0, x0) * ((1.0 - fx) * (1.0 - fy))[None]
            + tap(y0, x0 + 1) * (fx * (1.0 - fy))[None]
            + tap(y0 + 1, x0) * ((1.0 - fx) * fy)[None]
            + tap(y0 + 1, x0 + 1) * (fx * fy)[None])


def affine_placer_reference(images, sticker, mask, aff):
    N, C, H, W = images.shape
    pad_sticker = _pad_to_target(sticker.astype(jnp.float32), (H, W))
    pad_mask = _pad_to_target(mask.astype(jnp.float32), (H, W))
    Hp, Wp = pad_sticker.shape[1:]

    jx = (2.0 * jnp.arange(W, dtype=jnp.float32) + 1.0) / W - 1.0
    iy = (2.0 * jnp.arange(H, dtype=jnp.float32) + 1.0) / H - 1.0
    yv, xv = jnp.meshgrid(iy, jx, indexing="ij")

    outs = []
    for n in range(N):
        a = aff[n]
        xs = a[0] * xv + a[1] * yv + a[2]
        ys = a[3] * xv + a[4] * yv + a[5]
        px = (xs + 1.0) * (Wp * 0.5) - 0.5
        py = (ys + 1.0) * (Hp * 0.5) - 0.5
        warped_sticker = _grid_sample_bilinear_zeros(pad_sticker, px, py)
        warped_mask = _grid_sample_bilinear_zeros(pad_mask, px, py)
        outs.append(warped_sticker + images[n].astype(jnp.float32) * (1.0 - warped_mask))
    return jnp.stack(outs, axis=0)


if __name__ == "__main__":
    # Small shapes consistent with the module: batch=4, channels=3, 16x16 images,
    # 8x8 sticker/mask placed with random rotation/scale/translation.
    N, C, H, W = 4, 3, 16, 16
    Hm = Wm = 8
    max_rotation = 30.0        # degrees
    max_translation = 0.25     # in normalized [-1, 1] coords
    scale_range = (0.9, 1.1)

    key = jax.random.PRNGKey(0)
    k_img, k_stk, k_msk, k_aff = jax.random.split(key, 4)

    images = jax.random.uniform(k_img, (N, C, H, W), dtype=jnp.float32)
    sticker = 0.1 * jax.random.normal(k_stk, (C, Hm, Wm), dtype=jnp.float32)
    mask = (jax.random.uniform(k_msk, (C, Hm, Wm)) > 0.3).astype(jnp.float32)

    # Per-forward random affine transform (replaces torch's samples.random_(0, 1000)).
    aff = sample_affine_params(k_aff, N, max_rotation, max_translation, scale_range)

    out = affine_placer_forward(images, sticker, mask, aff)
    out = jax.block_until_ready(out)

    ref = affine_placer_reference(images, sticker, mask, aff)
    assert out.shape == (N, C, H, W)
    # Default MXU precision (bf16 operands, f32 accumulate) => loosened tolerance vs the
    # f32 gather-based reference (accuracy/perf tradeoff per the review, not a bug).
    assert jnp.allclose(out, ref, atol=2e-2, rtol=0.0), "mismatch vs pure-JAX reference"

    print("KERNEL_OK")
</pallas_src>

<mosaic_0001>
module attributes {stable_mosaic.version = 11 : i64} {
  func.func @_affine_placer_kernel(%arg0: i32, %arg1: i32, %arg2: memref<24xf32, #tpu.memory_space<smem>>, %arg3: memref<2x256xf32, #tpu.memory_space<vmem>>, %arg4: memref<96x16xf32, #tpu.memory_space<vmem>>, %arg5: memref<2x3x256xf32, #tpu.memory_space<vmem>>, %arg6: memref<2x3x256xf32, #tpu.memory_space<vmem>>) attributes {dimension_semantics = [#tpu.dimension_semantics<parallel>, #tpu.dimension_semantics<parallel>], iteration_bounds = array<i64: 2, 1>, scalar_prefetch = 0 : i64, scratch_operands = 0 : i64, tpu.core_type = #tpu.core_type<tc>, window_params = [{transform_indices = @transform_0, window_bounds = array<i64: 24>}, {transform_indices = @transform_1, window_bounds = array<i64: 2, 256>}, {pipeline_mode = #tpu.pipeline_mode<synchronous>, transform_indices = @transform_2, window_bounds = array<i64: 96, 16>}, {transform_indices = @transform_3, window_bounds = array<i64: 2, 3, 256>}, {transform_indices = @transform_4, window_bounds = array<i64: 2, 3, 256>}]} {
    %c0 = arith.constant 0 : index
    %c0_0 = arith.constant 0 : index
    %0 = vector.load %arg3[%c0, %c0_0] : memref<2x256xf32, #tpu.memory_space<vmem>>, vector<1x256xf32>
    %c1 = arith.constant 1 : index
    %c0_1 = arith.constant 0 : index
    %1 = vector.load %arg3[%c1, %c0_1] : memref<2x256xf32, #tpu.memory_space<vmem>>, vector<1x256xf32>
    %2 = tpu.iota {dimensions = array<i32: 0>} : vector<16x256xi32>
    %3 = arith.sitofp %2 : vector<16x256xi32> to vector<16x256xf32>
    %4 = tpu.iota {dimensions = array<i32: 0>} : vector<16x256xi32>
    %5 = arith.sitofp %4 : vector<16x256xi32> to vector<16x256xf32>
    %c0_2 = arith.constant 0 : index
    %c0_3 = arith.constant 0 : index
    %6 = vector.load %arg4[%c0_2, %c0_3] : memref<96x16xf32, #tpu.memory_space<vmem>>, vector<96x16xf32>
    %c0_i32 = arith.constant 0 : i32
    %c2_i32 = arith.constant 2 : i32
    %7 = arith.muli %arg0, %c2_i32 : i32
    %8 = arith.addi %7, %c0_i32 : i32
    %c6_i32 = arith.constant 6 : i32
    %9 = arith.muli %8, %c6_i32 : i32
    %c0_i32_4 = arith.constant 0 : i32
    %10 = arith.addi %9, %c0_i32_4 : i32
    %11 = arith.index_cast %10 : i32 to index
    %12 = memref.load %arg2[%11] : memref<24xf32, #tpu.memory_space<smem>>
    %c1_i32 = arith.constant 1 : i32
    %13 = arith.addi %9, %c1_i32 : i32
    %14 = arith.index_cast %13 : i32 to index
    %15 = memref.load %arg2[%14] : memref<24xf32, #tpu.memory_space<smem>>
    %c2_i32_5 = arith.constant 2 : i32
    %16 = arith.addi %9, %c2_i32_5 : i32
    %17 = arith.index_cast %16 : i32 to index
    %18 = memref.load %arg2[%17] : memref<24xf32, #tpu.memory_space<smem>>
    %c3_i32 = arith.constant 3 : i32
    %19 = arith.addi %9, %c3_i32 : i32
    %20 = arith.index_cast %19 : i32 to index
    %21 = memref.load %arg2[%20] : memref<24xf32, #tpu.memory_space<smem>>
    %c4_i32 = arith.constant 4 : i32
    %22 = arith.addi %9, %c4_i32 : i32
    %23 = arith.index_cast %22 : i32 to index
    %24 = memref.load %arg2[%23] : memref<24xf32, #tpu.memory_space<smem>>
    %c5_i32 = arith.constant 5 : i32
    %25 = arith.addi %9, %c5_i32 : i32
    %26 = arith.index_cast %25 : i32 to index
    %27 = memref.load %arg2[%26] : memref<24xf32, #tpu.memory_space<smem>>
    %28 = vector.broadcast %12 : f32 to vector<1x256xf32>
    %29 = arith.mulf %28, %0 : vector<1x256xf32>
    %30 = vector.broadcast %15 : f32 to vector<1x256xf32>
    %31 = arith.mulf %30, %1 : vector<1x256xf32>
    %32 = arith.addf %29, %31 : vector<1x256xf32>
    %33 = vector.broadcast %18 : f32 to vector<1x256xf32>
    %34 = arith.addf %32, %33 : vector<1x256xf32>
    %35 = vector.broadcast %21 : f32 to vector<1x256xf32>
    %36 = arith.mulf %35, %0 : vector<1x256xf32>
    %37 = vector.broadcast %24 : f32 to vector<1x256xf32>
    %38 = arith.mulf %37, %1 : vector<1x256xf32>
    %39 = arith.addf %36, %38 : vector<1x256xf32>
    %40 = vector.broadcast %27 : f32 to vector<1x256xf32>
    %41 = arith.addf %39, %40 : vector<1x256xf32>
    %cst = arith.constant 1.000000e+00 : f32
    %42 = vector.broadcast %cst : f32 to vector<1x256xf32>
    %43 = arith.addf %34, %42 : vector<1x256xf32>
    %cst_6 = arith.constant 8.000000e+00 : f32
    %44 = vector.broadcast %cst_6 : f32 to vector<1x256xf32>
    %45 = arith.mulf %43, %44 : vector<1x256xf32>
    %cst_7 = arith.constant 5.000000e-01 : f32
    %46 = vector.broadcast %cst_7 : f32 to vector<1x256xf32>
    %47 = arith.subf %45, %46 : vector<1x256xf32>
    %cst_8 = arith.constant 1.000000e+00 : f32
    %48 = vector.broadcast %cst_8 : f32 to vector<1x256xf32>
    %49 = arith.addf %41, %48 : vector<1x256xf32>
    %cst_9 = arith.constant 8.000000e+00 : f32
    %50 = vector.broadcast %cst_9 : f32 to vector<1x256xf32>
    %51 = arith.mulf %49, %50 : vector<1x256xf32>
    %cst_10 = arith.constant 5.000000e-01 : f32
    %52 = vector.broadcast %cst_10 : f32 to vector<1x256xf32>
    %53 = arith.subf %51, %52 : vector<1x256xf32>
    %54 = vector.broadcast %47 : vector<1x256xf32> to vector<16x256xf32>
    %55 = arith.subf %3, %54 : vector<16x256xf32>
    %56 = math.absf %55 : vector<16x256xf32>
    %cst_11 = arith.constant 1.000000e+00 : f32
    %57 = vector.broadcast %cst_11 : f32 to vector<16x256xf32>
    %58 = arith.subf %57, %56 : vector<16x256xf32>
    %cst_12 = arith.constant 0.000000e+00 : f32
    %59 = vector.broadcast %cst_12 : f32 to vector<16x256xf32>
    %60 = arith.maximumf %58, %59 : vector<16x256xf32>
    %61 = vector.broadcast %53 : vector<1x256xf32> to vector<16x256xf32>
    %62 = arith.subf %5, %61 : vector<16x256xf32>
    %63 = math.absf %62 : vector<16x256xf32>
    %cst_13 = arith.constant 1.000000e+00 : f32
    %64 = vector.broadcast %cst_13 : f32 to vector<16x256xf32>
    %65 = arith.subf %64, %63 : vector<16x256xf32>
    %cst_14 = arith.constant 0.000000e+00 : f32
    %66 = vector.broadcast %cst_14 : f32 to vector<16x256xf32>
    %67 = arith.maximumf %65, %66 : vector<16x256xf32>
    %cst_15 = arith.constant dense<0.000000e+00> : vector<96x256xf32>
    %68 = tpu.matmul %6, %60, %cst_15 {dimension_numbers = #tpu.dot_dimension_numbers<[1], [0], [0], [1], [0, 0, 1, 1], [], []>} : vector<96x16xf32>, vector<16x256xf32>, vector<96x256xf32> -> vector<96x256xf32>
    %69 = vector.shape_cast %68 : vector<96x256xf32> to vector<2x3x16x256xf32>
    %70 = vector.shape_cast %67 : vector<16x256xf32> to vector<1x1x16x256xf32>
    %71 = vector.broadcast %70 : vector<1x1x16x256xf32> to vector<2x3x16x256xf32>
    %72 = arith.mulf %69, %71 : vector<2x3x16x256xf32>
    %cst_16 = arith.constant dense<0.000000e+00> : vector<2x3x256xf32>
    %73 = vector.multi_reduction <add>, %72, %cst_16 [2] : vector<2x3x16x256xf32> to vector<2x3x256xf32>
    %74 = vector.extract_strided_slice %73 {offsets = [0, 0, 0], sizes = [1, 3, 256], strides = [1, 1, 1]} : vector<2x3x256xf32> to vector<1x3x256xf32>
    %75 = vector.shape_cast %74 : vector<1x3x256xf32> to vector<3x256xf32>
    %76 = vector.extract_strided_slice %73 {offsets = [1, 0, 0], sizes = [1, 3, 256], strides = [1, 1, 1]} : vector<2x3x256xf32> to vector<1x3x256xf32>
    %77 = vector.shape_cast %76 : vector<1x3x256xf32> to vector<3x256xf32>
    %78 = arith.index_cast %c0_i32 : i32 to index
    %c0_17 = arith.constant 0 : index
    %c0_18 = arith.constant 0 : index
    %79 = vector.load %arg5[%78, %c0_17, %c0_18] : memref<2x3x256xf32, #tpu.memory_space<vmem>>, vector<1x3x256xf32>
    %80 = vector.shape_cast %79 : vector<1x3x256xf32> to vector<3x256xf32>
    %cst_19 = arith.constant 1.000000e+00 : f32
    %81 = vector.broadcast %cst_19 : f32 to vector<3x256xf32>
    %82 = arith.subf %81, %77 : vector<3x256xf32>
    %83 = arith.mulf %80, %82 : vector<3x256xf32>
    %84 = arith.addf %75, %83 : vector<3x256xf32>
    %85 = arith.index_cast %c0_i32 : i32 to index
    %c0_20 = arith.constant 0 : index
    %c0_21 = arith.constant 0 : index
    %86 = vector.load %arg6[%85, %c0_20, %c0_21] : memref<2x3x256xf32, #tpu.memory_space<vmem>>, vector<1x3x256xf32>
    %87 = vector.shape_cast %86 : vector<1x3x256xf32> to vector<3x256xf32>
    %88 = vector.shape_cast %84 : vector<3x256xf32> to vector<1x3x256xf32>
    tpu.vector_store %arg6[%85, %c0_20, %c0_21], %88 {strides = array<i32>} : memref<2x3x256xf32, #tpu.memory_space<vmem>>, vector<1x3x256xf32>,
    %c1_i32_22 = arith.constant 1 : i32
    %c2_i32_23 = arith.constant 2 : i32
    %89 = arith.muli %arg0, %c2_i32_23 : i32
    %90 = arith.addi %89, %c1_i32_22 : i32
    %c6_i32_24 = arith.constant 6 : i32
    %91 = arith.muli %90, %c6_i32_24 : i32
    %c0_i32_25 = arith.constant 0 : i32
    %92 = arith.addi %91, %c0_i32_25 : i32
    %93 = arith.index_cast %92 : i32 to index
    %94 = memref.load %arg2[%93] : memref<24xf32, #tpu.memory_space<smem>>
    %c1_i32_26 = arith.constant 1 : i32
    %95 = arith.addi %91, %c1_i32_26 : i32
    %96 = arith.index_cast %95 : i32 to index
    %97 = memref.load %arg2[%96] : memref<24xf32, #tpu.memory_space<smem>>
    %c2_i32_27 = arith.constant 2 : i32
    %98 = arith.addi %91, %c2_i32_27 : i32
    %99 = arith.index_cast %98 : i32 to index
    %100 = memref.load %arg2[%99] : memref<24xf32, #tpu.memory_space<smem>>
    %c3_i32_28 = arith.constant 3 : i32
    %101 = arith.addi %91, %c3_i32_28 : i32
    %102 = arith.index_cast %101 : i32 to index
    %103 = memref.load %arg2[%102] : memref<24xf32, #tpu.memory_space<smem>>
    %c4_i32_29 = arith.constant 4 : i32
    %104 = arith.addi %91, %c4_i32_29 : i32
    %105 = arith.index_cast %104 : i32 to index
    %106 = memref.load %arg2[%105] : memref<24xf32, #tpu.memory_space<smem>>
    %c5_i32_30 = arith.constant 5 : i32
    %107 = arith.addi %91, %c5_i32_30 : i32
    %108 = arith.index_cast %107 : i32 to index
    %109 = memref.load %arg2[%108] : memref<24xf32, #tpu.memory_space<smem>>
    %110 = vector.broadcast %94 : f32 to vector<1x256xf32>
    %111 = arith.mulf %110, %0 : vector<1x256xf32>
    %112 = vector.broadcast %97 : f32 to vector<1x256xf32>
    %113 = arith.mulf %112, %1 : vector<1x256xf32>
    %114 = arith.addf %111, %113 : vector<1x256xf32>
    %115 = vector.broadcast %100 : f32 to vector<1x256xf32>
    %116 = arith.addf %114, %115 : vector<1x256xf32>
    %117 = vector.broadcast %103 : f32 to vector<1x256xf32>
    %118 = arith.mulf %117, %0 : vector<1x256xf32>
    %119 = vector.broadcast %106 : f32 to vector<1x256xf32>
    %120 = arith.mulf %119, %1 : vector<1x256xf32>
    %121 = arith.addf %118, %120 : vector<1x256xf32>
    %122 = vector.broadcast %109 : f32 to vector<1x256xf32>
    %123 = arith.addf %121, %122 : vector<1x256xf32>
    %cst_31 = arith.constant 1.000000e+00 : f32
    %124 = vector.broadcast %cst_31 : f32 to vector<1x256xf32>
    %125 = arith.addf %116, %124 : vector<1x256xf32>
    %cst_32 = arith.constant 8.000000e+00 : f32
    %126 = vector.broadcast %cst_32 : f32 to vector<1x256xf32>
    %127 = arith.mulf %125, %126 : vector<1x256xf32>
    %cst_33 = arith.constant 5.000000e-01 : f32
    %128 = vector.broadcast %cst_33 : f32 to vector<1x256xf32>
    %129 = arith.subf %127, %128 : vector<1x256xf32>
    %cst_34 = arith.constant 1.000000e+00 : f32
    %130 = vector.broadcast %cst_34 : f32 to vector<1x256xf32>
    %131 = arith.addf %123, %130 : vector<1x256xf32>
    %cst_35 = arith.constant 8.000000e+00 : f32
    %132 = vector.broadcast %cst_35 : f32 to vector<1x256xf32>
    %133 = arith.mulf %131, %132 : vector<1x256xf32>
    %cst_36 = arith.constant 5.000000e-01 : f32
    %134 = vector.broadcast %cst_36 : f32 to vector<1x256xf32>
    %135 = arith.subf %133, %134 : vector<1x256xf32>
    %136 = vector.broadcast %129 : vector<1x256xf32> to vector<16x256xf32>
    %137 = arith.subf %3, %136 : vector<16x256xf32>
    %138 = math.absf %137 : vector<16x256xf32>
    %cst_37 = arith.constant 1.000000e+00 : f32
    %139 = vector.broadcast %cst_37 : f32 to vector<16x256xf32>
    %140 = arith.subf %139, %138 : vector<16x256xf32>
    %cst_38 = arith.constant 0.000000e+00 : f32
    %141 = vector.broadcast %cst_38 : f32 to vector<16x256xf32>
    %142 = arith.maximumf %140, %141 : vector<16x256xf32>
    %143 = vector.broadcast %135 : vector<1x256xf32> to vector<16x256xf32>
    %144 = arith.subf %5, %143 : vector<16x256xf32>
    %145 = math.absf %144 : vector<16x256xf32>
    %cst_39 = arith.constant 1.000000e+00 : f32
    %146 = vector.broadcast %cst_39 : f32 to vector<16x256xf32>
    %147 = arith.subf %146, %145 : vector<16x256xf32>
    %cst_40 = arith.constant 0.000000e+00 : f32
    %148 = vector.broadcast %cst_40 : f32 to vector<16x256xf32>
    %149 = arith.maximumf %147, %148 : vector<16x256xf32>
    %cst_41 = arith.constant dense<0.000000e+00> : vector<96x256xf32>
    %150 = tpu.matmul %6, %142, %cst_41 {dimension_numbers = #tpu.dot_dimension_numbers<[1], [0], [0], [1], [0, 0, 1, 1], [], []>} : vector<96x16xf32>, vector<16x256xf32>, vector<96x256xf32> -> vector<96x256xf32>
    %151 = vector.shape_cast %150 : vector<96x256xf32> to vector<2x3x16x256xf32>
    %152 = vector.shape_cast %149 : vector<16x256xf32> to vector<1x1x16x256xf32>
    %153 = vector.broadcast %152 : vector<1x1x16x256xf32> to vector<2x3x16x256xf32>
    %154 = arith.mulf %151, %153 : vector<2x3x16x256xf32>
    %cst_42 = arith.constant dense<0.000000e+00> : vector<2x3x256xf32>
    %155 = vector.multi_reduction <add>, %154, %cst_42 [2] : vector<2x3x16x256xf32> to vector<2x3x256xf32>
    %156 = vector.extract_strided_slice %155 {offsets = [0, 0, 0], sizes = [1, 3, 256], strides = [1, 1, 1]} : vector<2x3x256xf32> to vector<1x3x256xf32>
    %157 = vector.shape_cast %156 : vector<1x3x256xf32> to vector<3x256xf32>
    %158 = vector.extract_strided_slice %155 {offsets = [1, 0, 0], sizes = [1, 3, 256], strides = [1, 1, 1]} : vector<2x3x256xf32> to vector<1x3x256xf32>
    %159 = vector.shape_cast %158 : vector<1x3x256xf32> to vector<3x256xf32>
    %160 = arith.index_cast %c1_i32_22 : i32 to index
    %c0_43 = arith.constant 0 : index
    %c0_44 = arith.constant 0 : index
    %161 = vector.load %arg5[%160, %c0_43, %c0_44] : memref<2x3x256xf32, #tpu.memory_space<vmem>>, vector<1x3x256xf32>
    %162 = vector.shape_cast %161 : vector<1x3x256xf32> to vector<3x256xf32>
    %cst_45 = arith.constant 1.000000e+00 : f32
    %163 = vector.broadcast %cst_45 : f32 to vector<3x256xf32>
    %164 = arith.subf %163, %159 : vector<3x256xf32>
    %165 = arith.mulf %162, %164 : vector<3x256xf32>
    %166 = arith.addf %157, %165 : vector<3x256xf32>
    %167 = arith.index_cast %c1_i32_22 : i32 to index
    %c0_46 = arith.constant 0 : index
    %c0_47 = arith.constant 0 : index
    %168 = vector.load %arg6[%167, %c0_46, %c0_47] : memref<2x3x256xf32, #tpu.memory_space<vmem>>, vector<1x3x256xf32>
    %169 = vector.shape_cast %168 : vector<1x3x256xf32> to vector<3x256xf32>
    %170 = vector.shape_cast %166 : vector<3x256xf32> to vector<1x3x256xf32>
    tpu.vector_store %arg6[%167, %c0_46, %c0_47], %170 {strides = array<i32>} : memref<2x3x256xf32, #tpu.memory_space<vmem>>, vector<1x3x256xf32>,
    %c2_i32_48 = arith.constant 2 : i32
    return
  }
  func.func @transform_0(%arg0: i32, %arg1: i32) -> i32 {
    %c0_i32 = arith.constant 0 : i32
    %c0_i32_0 = arith.constant 0 : i32
    return %c0_i32 : i32
  }
  func.func @transform_1(%arg0: i32, %arg1: i32) -> (i32, i32) {
    %c0_i32 = arith.constant 0 : i32
    %c0_i32_0 = arith.constant 0 : i32
    return %c0_i32, %arg1 : i32, i32
  }
  func.func @transform_2(%arg0: i32, %arg1: i32) -> (i32, i32) {
    %c0_i32 = arith.constant 0 : i32
    %c0_i32_0 = arith.constant 0 : i32
    %c0_i32_1 = arith.constant 0 : i32
    return %c0_i32, %c0_i32_0 : i32, i32
  }
  func.func @transform_3(%arg0: i32, %arg1: i32) -> (i32, i32, i32) {
    %c0_i32 = arith.constant 0 : i32
    %c0_i32_0 = arith.constant 0 : i32
    return %arg0, %c0_i32, %arg1 : i32, i32, i32
  }
  func.func @transform_4(%arg0: i32, %arg1: i32) -> (i32, i32, i32) {
    %c0_i32 = arith.constant 0 : i32
    %c0_i32_0 = arith.constant 0 : i32
    return %arg0, %c0_i32, %arg1 : i32, i32, i32
  }
}

</mosaic_0001>

<llo_original>
// kernel: tpu_custom_call.1
$region0: #{tpu_custom_call.1}
  #allocation0 [shape = 'u32[]', space=smem, size = 0x4, offset = 0x4, fixed_abs, tag = 'smem constant byte address 0x4 - core index']
  #allocation1 [shape = 'u32[144,128]{1,0:T(1,128)}', space=vmem, size = 0x12000, scoped, tag = 'internal scratch']
  %s0 = inlined_call_operand.vmem [shape: f32[24], index: 0, kind: input, shape index: {}]
  %s1 = inlined_call_operand.vmem [shape: f32[2,256], index: 1, kind: input, shape index: {}]
  %s2 = inlined_call_operand.vmem [shape: f32[96,16], index: 2, kind: input, shape index: {}]
  %s3 = inlined_call_operand.vmem [shape: f32[4,3,256], index: 3, kind: input, shape index: {}]
  %s4 = inlined_call_operand.vmem [shape: f32[4,3,256], index: 4, kind: output, shape index: {}]
  %s5 = sld [smem:[#allocation0]]
  $region53: #{tpu_custom_call.1} parent=0
    _
  %s7 = ssub.s32 1, %s5
  %s8 = scalar_select 0, %s7, %s5
  $region1: #{tpu_custom_call.1} parent=0
    #allocation2 [shape = 'u8[512]{0}', space=smem, size = 0x200, scoped, tag = 'input window, operand 0, single buffered']
    #allocation3 [shape = 's32[2]{0}', space=sflag, size = 0x8, scoped, tag = 'scoped memory for tpu_custom_call.1']
    %9 = vsyncpa [#allocation3], 0
    loop: start=0, step=1, limit=4
    $region2: #{tpu_custom_call.1} parent=1 // loop_pre_header
      _
    $region3: #{tpu_custom_call.1} parent=1 // loop_header
      %s11 = sphi 0, %s15
      %p12 = scmp.ge.s32.totalorder %s11, 4
      %s18 = sphi 0, %s30
      %s19 = sphi 0, %s26
      %s20 = sphi 0, %s18
      %s21 = sphi 0, %s19
      %s22 = sphi 0, %s20
      %s23 = sphi 0, %s21
      %s31 = sphi 0, %s31
      %s33 = sphi 0, %s31
      %s34 = sphi 0, %s33
      %s48 = sphi 0, %s34
      %s54 = sphi 0, %s56
      %s57 = sphi 0, %s54
      %s58 = sphi 0, %s57
      %s74 = sphi 0, %s58
      %s78 = sphi 0, %s78
      %s80 = sphi 0, %s78
      %s81 = sphi 0, %s80
      %s95 = sphi 0, %s81
      %s103 = sphi 0, %s105
      %s106 = sphi 0, %s103
      %s107 = sphi 0, %s106
      %s123 = sphi 0, %s107
      %s131 = sphi 0, %s133
      %s134 = sphi 0, %s131
      %s135 = sphi 0, %s134
      %s151 = sphi 0, %s135
    $region4: #{tpu_custom_call.1} parent=1 // loop_header_branch
      %14 = sbr.rel (%p12) target = $region8
    $region5: #{tpu_custom_call.1} parent=1 // loop_body
      %s16 = ssub.s32 %s11, 1
      %s17 = ssub.s32 %s11, 2
      %s24 = sadd.s32 1, %s19
      %p25 = scmp.ge.s32.totalorder %s24, 1
      %s26 = scalar_select %p25, 0, %s24
      %s27 = sadd.s32 1, %s18
      %s28 = scalar_select %p25, %s27, %s18
      %p29 = scmp.ge.s32.totalorder %s28, 2
      %s30 = scalar_select %p29, 0, %s28
      %s32 = sadd.s32 %s31, 1
      %p35 = scmp.eq.s32.totalorder %s11, 1
      %p36 = scmp.ne.s32.totalorder %s31, %s33
      %p37 = scmp.eq.s32.totalorder %s11, 0
      %p38 = por %p36, %p37
      %p39 = scmp.ne.s32.totalorder %s31, %s33
      %p40 = scmp.eq.s32.totalorder %s16, 1
      %p41 = por %p39, %p40
      %p42 = scmp.ne.s32.totalorder %s33, %s34
      %p43 = scmp.eq.s32.totalorder %s16, 0
      %p44 = por %p42, %p43
      %p45 = scmp.ne.s32.totalorder %s33, %s34
      %p46 = scmp.eq.s32.totalorder %s17, 1
      %p47 = por %p45, %p46
      %p49 = scmp.ne.s32.totalorder %s34, %s48
      %p50 = scmp.eq.s32.totalorder %s17, 0
      %p51 = por %p49, %p50
      %s52 = ssub.s32 %s19, %s26
      %p53 = scmp.eq.s32.totalorder %s52, 0
      %s55 = sadd.s32 %s54, 1
      %s56 = scalar_select %p53, %s54, %s55
      %p59 = pneg %p53
      %p60 = scmp.eq.s32.totalorder %s11, 1
      %p61 = por %p59, %p60
      %p62 = scmp.ne.s32.totalorder %s54, %s57
      %p63 = scmp.eq.s32.totalorder %s11, 0
      %p64 = por %p62, %p63
      %p65 = scmp.ne.s32.totalorder %s54, %s57
      %p66 = scmp.eq.s32.totalorder %s16, 1
      %p67 = por %p65, %p66
      %p68 = scmp.ne.s32.totalorder %s57, %s58
      %p69 = scmp.eq.s32.totalorder %s16, 0
      %p70 = por %p68, %p69
      %p71 = scmp.ne.s32.totalorder %s57, %s58
      %p72 = scmp.eq.s32.totalorder %s17, 1
      %p73 = por %p71, %p72
      %p75 = scmp.ne.s32.totalorder %s58, %s74
      %p76 = scmp.eq.s32.totalorder %s17, 0
      %p77 = por %p75, %p76
      %s79 = sadd.s32 %s78, 1
      %p82 = scmp.eq.s32.totalorder %s11, 1
      %p83 = scmp.ne.s32.totalorder %s78, %s80
      %p84 = scmp.eq.s32.totalorder %s11, 0
      %p85 = por %p83, %p84
      %p86 = scmp.ne.s32.totalorder %s78, %s80
      %p87 = scmp.eq.s32.totalorder %s16, 1
      %p88 = por %p86, %p87
      %p89 = scmp.ne.s32.totalorder %s80, %s81
      %p90 = scmp.eq.s32.totalorder %s16, 0
      %p91 = por %p89, %p90
      %p92 = scmp.ne.s32.totalorder %s80, %s81
      %p93 = scmp.eq.s32.totalorder %s17, 1
      %p94 = por %p92, %p93
      %p96 = scmp.ne.s32.totalorder %s81, %s95
      %p97 = scmp.eq.s32.totalorder %s17, 0
      %p98 = por %p96, %p97
      %s99 = ssub.s32 %s18, %s30
      %s100 = ssub.s32 %s19, %s26
      %s101 = sor.u32 %s99, %s100
      %p102 = scmp.eq.s32.totalorder %s101, 0
      %s104 = sadd.s32 %s103, 1
      %s105 = scalar_select %p102, %s103, %s104
      %p108 = pneg %p102
      %p109 = scmp.eq.s32.totalorder %s11, 1
      %p110 = por %p108, %p109
      %p111 = scmp.ne.s32.totalorder %s103, %s106
      %p112 = scmp.eq.s32.totalorder %s11, 0
      %p113 = por %p111, %p112
      %p114 = scmp.ne.s32.totalorder %s103, %s106
      %p115 = scmp.eq.s32.totalorder %s16, 1
      %p116 = por %p114, %p115
      %p117 = scmp.ne.s32.totalorder %s106, %s107
      %p118 = scmp.eq.s32.totalorder %s16, 0
      %p119 = por %p117, %p118
      %p120 = scmp.ne.s32.totalorder %s106, %s107
      %p121 = scmp.eq.s32.totalorder %s17, 1
      %p122 = por %p120, %p121
      %p124 = scmp.ne.s32.totalorder %s107, %s123
      %p125 = scmp.eq.s32.totalorder %s17, 0
      %p126 = por %p124, %p125
      %s127 = ssub.s32 %s18, %s30
      %s128 = ssub.s32 %s19, %s26
      %s129 = sor.u32 %s127, %s128
      %p130 = scmp.eq.s32.totalorder %s129, 0
      %s132 = sadd.s32 %s131, 1
      %s133 = scalar_select %p130, %s131, %s132
      %p136 = pneg %p130
      %p137 = scmp.eq.s32.totalorder %s11, 1
      %p138 = por %p136, %p137
      %p139 = scmp.ne.s32.totalorder %s131, %s134
      %p140 = scmp.eq.s32.totalorder %s11, 0
      %p141 = por %p139, %p140
      %p142 = scmp.ne.s32.totalorder %s131, %s134
      %p143 = scmp.eq.s32.totalorder %s16, 1
      %p144 = por %p142, %p143
      %p145 = scmp.ne.s32.totalorder %s134, %s135
      %p146 = scmp.eq.s32.totalorder %s16, 0
      %p147 = por %p145, %p146
      %p148 = scmp.ne.s32.totalorder %s134, %s135
      %p149 = scmp.eq.s32.totalorder %s17, 1
      %p150 = por %p148, %p149
      %p152 = scmp.ne.s32.totalorder %s135, %s151
      %p153 = scmp.eq.s32.totalorder %s17, 0
      %p154 = por %p152, %p153
      %p155 = scmp.le.s32.totalorder 1, %s11
      %p156 = scmp.lt.s32.totalorder %s11, 3
      %p157 = pnand %p155, %p156
      %p158 = pneg %p157
      // Predicated region
      $region9: #{tpu_custom_call.1} parent=5 // pred_check
        _
      $region10: #{tpu_custom_call.1} parent=5 // pred_check_branch
        %160 = sbr.rel (%p157) target = $region12
      $region11: #{tpu_custom_call.1} parent=5 // pred_region
        %s161 = ssub.s32 %s11, 1
        // Predicated region
        $region13: #{tpu_custom_call.1} parent=11 // pred_check
          %p162 = pneg %p44
        $region14: #{tpu_custom_call.1} parent=11 // pred_check_branch
          %164 = sbr.rel (%p162) target = $region16
        $region15: #{tpu_custom_call.1} parent=11 // pred_region
          %s166 = ssub.s32 16, 16
          %167 = vsyncadd [#allocation3], %s166
          %s169 = sshll.u32 %s0, 4
          %s170 = int_to_ptr.vmem [resolvable:$true] %s169
          %172 = dma.vmem_to_smem %s170, 16, [#allocation2], [#allocation3]
        $region16: #{tpu_custom_call.1} parent=11 // pred_fallthru
          _
        // Predicated region
        $region17: #{tpu_custom_call.1} parent=11 // pred_check
          %p173 = pneg %p70
        $region18: #{tpu_custom_call.1} parent=11 // pred_check_branch
          %175 = sbr.rel (%p173) target = $region20
        $region19: #{tpu_custom_call.1} parent=11 // pred_region
          %s176 = smul.u32 2, %s21
          %p177 = scmp.lt.s32.totalorder %s176, 1
          %s178 = scalar_select %p177, %s176, 1
          %s179 = smul.addr %s178, 2
          %s180 = scalar_lea.vmem %s1, %s179
          %s181 = smul.u32 2, %s21
        $region20: #{tpu_custom_call.1} parent=11 // pred_fallthru
          _
        // Predicated region
        $region21: #{tpu_custom_call.1} parent=11 // pred_check
          %p182 = pneg %p91
        $region22: #{tpu_custom_call.1} parent=11 // pred_check_branch
          %184 = sbr.rel (%p182) target = $region24
        $region23: #{tpu_custom_call.1} parent=11 // pred_region
          _
        $region24: #{tpu_custom_call.1} parent=11 // pred_fallthru
          _
      $region12: #{tpu_custom_call.1} parent=5 // pred_fallthru
        _
      %p185 = scmp.lt.s32.totalorder %s11, 2
      // Predicated region
      $region25: #{tpu_custom_call.1} parent=5 // pred_check
        %p186 = pneg %p185
      $region26: #{tpu_custom_call.1} parent=5 // pred_check_branch
        %188 = sbr.rel (%p186) target = $region28
      $region27: #{tpu_custom_call.1} parent=5 // pred_region
        // Predicated region
        $region29: #{tpu_custom_call.1} parent=27 // pred_check
          %p189 = pneg %p113
        $region30: #{tpu_custom_call.1} parent=27 // pred_check_branch
          %191 = sbr.rel (%p189) target = $region32
        $region31: #{tpu_custom_call.1} parent=27 // pred_region
          %s192 = smul.u32 2, %s18
          %s193 = smul.u32 2, %s19
          %p194 = scmp.lt.s32.totalorder %s192, 3
          %s195 = scalar_select %p194, %s192, 3
          %p196 = scmp.lt.s32.totalorder %s193, 1
          %s197 = scalar_select %p196, %s193, 1
          %s198 = smul.addr %s195, 2
          %s199 = sadd.s32 %s197, %s198
          %s200 = smul.addr %s199, 4
          %s201 = scalar_lea.vmem %s3, %s200
          %s202 = smul.u32 2, %s18
          %s203 = smul.u32 2, %s19
        $region32: #{tpu_custom_call.1} parent=27 // pred_fallthru
          _
      $region28: #{tpu_custom_call.1} parent=5 // pred_fallthru
        _
      %p204 = scmp.le.s32.totalorder 1, %s11
      %p205 = scmp.lt.s32.totalorder %s11, 3
      %p206 = pnand %p204, %p205
      %p207 = pneg %p206
      // Predicated region
      $region33: #{tpu_custom_call.1} parent=5 // pred_check
        _
      $region34: #{tpu_custom_call.1} parent=5 // pred_check_branch
        %209 = sbr.rel (%p206) target = $region36
      $region35: #{tpu_custom_call.1} parent=5 // pred_region
        %s210 = ssub.s32 %s11, 1
        // Predicated region
        $region37: #{tpu_custom_call.1} parent=35 // pred_check
          %p211 = pneg %p44
        $region38: #{tpu_custom_call.1} parent=35 // pred_check_branch
          %213 = sbr.rel (%p211) target = $region40
        $region39: #{tpu_custom_call.1} parent=35 // pred_region
          %214 = dma.done [#allocation3], 16
        $region40: #{tpu_custom_call.1} parent=35 // pred_fallthru
          _
        %215 = sfence
        %p216 = pneg %p44
        %p217 = pneg %p41
        %s218 = smul.u32 2, %s21
        %p219 = scmp.lt.s32.totalorder %s218, 1
        %s220 = scalar_select %p219, %s218, 1
        %s221 = smul.addr %s220, 2
        %s222 = scalar_lea.vmem %s1, %s221
        %p223 = pneg %p70
        %p224 = pneg %p67
        %p225 = pneg %p91
        %p226 = pneg %p88
        %s227 = smul.u32 2, %s20
        %s228 = smul.u32 2, %s21
        %p229 = scmp.lt.s32.totalorder %s227, 3
        %s230 = scalar_select %p229, %s227, 3
        %p231 = scmp.lt.s32.totalorder %s228, 1
        %s232 = scalar_select %p231, %s228, 1
        %s233 = smul.addr %s230, 2
        %s234 = sadd.s32 %s232, %s233
        %s235 = smul.addr %s234, 4
        %s236 = scalar_lea.vmem %s3, %s235
        %p237 = pneg %p119
        %p238 = pneg %p116
        %p239 = pneg %p147
        %p240 = pneg %p144
        %s241 = smul.u32 2, %s20
        %s242 = smul.u32 2, %s21
        %p243 = scmp.lt.s32.totalorder %s241, 3
        %s244 = scalar_select %p243, %s241, 3
        %p245 = scmp.lt.s32.totalorder %s242, 1
        %s246 = scalar_select %p245, %s242, 1
        %s247 = smul.addr %s244, 2
        %s248 = sadd.s32 %s246, %s247
        %s249 = smul.addr %s248, 4
        %s250 = scalar_lea.vmem %s4, %s249
        %s251 = smul.u32 2, %s21
        %p252 = scmp.lt.s32.totalorder %s251, 1
        %s253 = scalar_select %p252, %s251, 1
        %s254 = smul.addr %s253, 2
        %s255 = scalar_lea.vmem %s1, %s254
        %s256 = smul.u32 2, %s21
        %s257 = smul.u32 2, %s20
        %s258 = smul.u32 2, %s21
        %p259 = scmp.lt.s32.totalorder %s257, 3
        %s260 = scalar_select %p259, %s257, 3
        %p261 = scmp.lt.s32.totalorder %s258, 1
        %s262 = scalar_select %p261, %s258, 1
        %s263 = smul.addr %s260, 2
        %s264 = sadd.s32 %s262, %s263
        %s265 = smul.addr %s264, 4
        %s266 = scalar_lea.vmem %s3, %s265
        %s267 = smul.u32 2, %s20
        %s268 = smul.u32 2, %s21
        %s269 = smul.u32 2, %s20
        %s270 = smul.u32 2, %s21
        %p271 = scmp.lt.s32.totalorder %s269, 3
        %s272 = scalar_select %p271, %s269, 3
        %p273 = scmp.lt.s32.totalorder %s270, 1
        %s274 = scalar_select %p273, %s270, 1
        %s275 = smul.addr %s272, 2
        %s276 = sadd.s32 %s274, %s275
        %s277 = smul.addr %s276, 4
        %s278 = scalar_lea.vmem %s4, %s277
        %s279 = smul.u32 2, %s20
        %s280 = smul.u32 2, %s21
        %v281 = vld [vmem:[%s255] ss:$2 sm:$0x3]
        %s282 = scalar_lea.vmem %s255, 1
        %v283 = vld [vmem:[%s282] ss:$2 sm:$0x3]
        %v284 = vlaneseq
        %v285 = vshrl.u32 %v284, 7
        %v286 = vadd.s32 %v285, 8
        %v287 = vcvt.s32.f32 %v285
        %v288 = vcvt.s32.f32 %v286
        %v289 = vld [vmem:[%s2] sm:$0xff]
        %v290 = vld [vmem:[%s2 + $0x8] sm:$0xff]
        %v291 = vld [vmem:[%s2 + $0x10] sm:$0xff]
        %v292 = vld [vmem:[%s2 + $0x18] sm:$0xff]
        %v293 = vld [vmem:[%s2 + $0x20] sm:$0xff]
        %v294 = vld [vmem:[%s2 + $0x28] sm:$0xff]
        %v295 = vld [vmem:[%s2 + $0x30] sm:$0xff]
        %v296 = vld [vmem:[%s2 + $0x38] sm:$0xff]
        %v297 = vld [vmem:[%s2 + $0x40] sm:$0xff]
        %v298 = vld [vmem:[%s2 + $0x48] sm:$0xff]
        %v299 = vld [vmem:[%s2 + $0x50] sm:$0xff]
        %v300 = vld [vmem:[%s2 + $0x58] sm:$0xff]
        %s301 = smul.u32 %s20, 12
        %s302 = sld [smem:[#allocation2 + %s301]]
        %s303 = sadd.s32 %s301, 1
        %s304 = sld [smem:[#allocation2 + %s303]]
        %s305 = sadd.s32 %s301, 2
        %s306 = sld [smem:[#allocation2 + %s305]]
        %s307 = sadd.s32 %s301, 3
        %s308 = sld [smem:[#allocation2 + %s307]]
        %s309 = sadd.s32 %s301, 4
        %s310 = sld [smem:[#allocation2 + %s309]]
        %s311 = sadd.s32 %s301, 5
        %s312 = sld [smem:[#allocation2 + %s311]]
        %v313 = vstv %s302
        %v314 = vmul.f32 %v313, %v281
        %v315 = vstv %s304
        %v316 = vmul.f32 %v315, %v283
        %v317 = vadd.f32 %v314, %v316
        %v318 = vstv %s306
        %v319 = vadd.f32 %v317, %v318
        %v320 = vstv %s308
        %v321 = vmul.f32 %v320, %v281
        %v322 = vstv %s310
        %v323 = vmul.f32 %v322, %v283
        %v324 = vadd.f32 %v321, %v323
        %v325 = vstv %s312
        %v326 = vadd.f32 %v324, %v325
        %v327 = vadd.f32 %v319, 1.0
        %v328 = vmul.f32 %v327, 8.0
        %v329 = vsub.f32 %v328, 0.5
        %v330 = vadd.f32 %v326, 1.0
        %v331 = vmul.f32 %v330, 8.0
        %v332 = vsub.f32 %v331, 0.5
        %v334 = vlaneseq
        %v335 = vshrl.u32 %v334, 7
        %v336 = vsub.s32 0, %v335
        %v337 = vrot.slane %v329, %v336
        %v338 = vlaneseq
        %v339 = vshrl.u32 %v338, 7
        %v340 = vsub.s32 1, %v339
        %v341 = vrot.slane %v329, %v340
        %v344 = vsub.f32 %v287, %v337
        %v345 = vsub.f32 %v287, %v341
        %v346 = vsub.f32 %v288, %v337
        %v347 = vsub.f32 %v288, %v341
        %v348 = vand.u32 2147483647, %v344
        %v349 = vand.u32 2147483647, %v345
        %v350 = vand.u32 2147483647, %v346
        %v351 = vand.u32 2147483647, %v347
        %v352 = vsub.f32 1.0, %v348
        %v353 = vsub.f32 1.0, %v349
        %v354 = vsub.f32 1.0, %v350
        %v355 = vsub.f32 1.0, %v351
        %v356 = vmax.f32 %v352, 0.0
        %v357 = vmax.f32 %v353, 0.0
        %v358 = vmax.f32 %v354, 0.0
        %v359 = vmax.f32 %v355, 0.0
        %v361 = vlaneseq
        %v362 = vshrl.u32 %v361, 7
        %v363 = vsub.s32 0, %v362
        %v364 = vrot.slane %v332, %v363
        %v365 = vlaneseq
        %v366 = vshrl.u32 %v365, 7
        %v367 = vsub.s32 1, %v366
        %v368 = vrot.slane %v332, %v367
        %v371 = vsub.f32 %v287, %v364
        %v372 = vsub.f32 %v287, %v368
        %v373 = vsub.f32 %v288, %v364
        %v374 = vsub.f32 %v288, %v368
        %v375 = vand.u32 2147483647, %v371
        %v376 = vand.u32 2147483647, %v372
        %v377 = vand.u32 2147483647, %v373
        %v378 = vand.u32 2147483647, %v374
        %v379 = vsub.f32 1.0, %v375
        %v380 = vsub.f32 1.0, %v376
        %v381 = vsub.f32 1.0, %v377
        %v382 = vsub.f32 1.0, %v378
        %v383 = vmax.f32 %v379, 0.0
        %v384 = vmax.f32 %v380, 0.0
        %v385 = vmax.f32 %v381, 0.0
        %v386 = vmax.f32 %v382, 0.0
        %vm387 = vcmask 130048
        %v389 = vsel %vm387, %v289, 0
        %v392 = vsel %vm387, %v290, 0
        %v395 = vsel %vm387, %v291, 0
        %v398 = vsel %vm387, %v292, 0
        %v401 = vsel %vm387, %v293, 0
        %v404 = vsel %vm387, %v294, 0
        %v407 = vsel %vm387, %v295, 0
        %v410 = vsel %vm387, %v296, 0
        %v413 = vsel %vm387, %v297, 0
        %v416 = vsel %vm387, %v298, 0
        %v419 = vsel %vm387, %v299, 0
        %v422 = vsel %vm387, %v300, 0
        %424 = vmatprep.subr.mxu0 %v357
        %425 = vmatpush1.msra.mxu0 %v356
        %426 = vmatprep.subr.mxu0 %v359
        %427 = vmatpush1.msra.mxu0 %v358
        %428 = vmatprep.subr.mxu0 0.0
        %429 = vmatpush1.msra.mxu0 0.0
        %430 = vmatprep.subr.mxu0 0.0
        %431 = vmatpush1.msra.mxu0 0.0
        %432 = vmatprep.subr.mxu0 0.0
        %433 = vmatpush1.msra.mxu0 0.0
        %434 = vmatprep.subr.mxu0 0.0
        %435 = vmatpush1.msra.mxu0 0.0
        %436 = vmatprep.subr.mxu0 0.0
        %437 = vmatpush1.msra.mxu0 0.0
        %438 = vmatprep.subr.mxu0 0.0
        %439 = vmatpush1.msra.mxu0 0.0
        %440 = vmatprep.subr.mxu0 0.0
        %441 = vmatpush1.msra.mxu0 0.0
        %442 = vmatprep.subr.mxu0 0.0
        %443 = vmatpush1.msra.mxu0 0.0
        %444 = vmatprep.subr.mxu0 0.0
        %445 = vmatpush1.msra.mxu0 0.0
        %446 = vmatprep.subr.mxu0 0.0
        %447 = vmatpush1.msra.mxu0 0.0
        %448 = vmatprep.subr.mxu0 0.0
        %449 = vmatpush1.msra.mxu0 0.0
        %450 = vmatprep.subr.mxu0 0.0
        %451 = vmatpush1.msra.mxu0 0.0
        %452 = vmatprep.subr.mxu0 0.0
        %453 = vmatpush1.msra.mxu0 0.0
        %454 = vmatprep.subr.mxu0 0.0
        %455 = vmatpush1.msra.mxu0 0.0
        %456 = vmatprep.subr.mxu0 0.0
        %457 = vmatpush1.msra.mxu0 0.0
        %458 = vmatprep.subr.mxu0 0.0
        %459 = vmatpush1.msra.mxu0 0.0
        %460 = vmatprep.subr.mxu0 0.0
        %461 = vmatpush1.msra.mxu0 0.0
        %462 = vmatprep.subr.mxu0 0.0
        %463 = vmatpush1.msra.mxu0 0.0
        %464 = vmatprep.subr.mxu0 0.0
        %465 = vmatpush1.msra.mxu0 0.0
        %466 = vmatprep.subr.mxu0 0.0
        %467 = vmatpush1.msra.mxu0 0.0
        %468 = vmatprep.subr.mxu0 0.0
        %469 = vmatpush1.msra.mxu0 0.0
        %470 = vmatprep.subr.mxu0 0.0
        %471 = vmatpush1.msra.mxu0 0.0
        %472 = vmatprep.subr.mxu0 0.0
        %473 = vmatpush1.msra.mxu0 0.0
        %474 = vmatprep.subr.mxu0 0.0
        %475 = vmatpush1.msra.mxu0 0.0
        %476 = vmatprep.subr.mxu0 0.0
        %477 = vmatpush1.msra.mxu0 0.0
        %478 = vmatprep.subr.mxu0 0.0
        %479 = vmatpush1.msra.mxu0 0.0
        %480 = vmatprep.subr.mxu0 0.0
        %481 = vmatpush1.msra.mxu0 0.0
        %482 = vmatprep.subr.mxu0 0.0
        %483 = vmatpush1.msra.mxu0 0.0
        %484 = vmatprep.subr.mxu0 0.0
        %485 = vmatpush1.msra.mxu0 0.0
        %486 = vmatprep.subr.mxu0 0.0
        %487 = vmatpush1.msra.mxu0 0.0
        %488 = vmatprep.mubr.f32.mxu0 0.0
        %489 = vmatmul.mubr.f32.gmra.mrb[0].mxu0 %v389
        %v490 = vpop.f32.mrb[0].mxu0
        %v491 = vadd.f32 0.0, %v490
        %v492 = vpop.f32.mrb[0].mxu0
        %v493 = vadd.f32 0.0, %v492
        %494 = vmatprep.mubr.f32.mxu0 0.0
        %495 = vmatmul.mubr.f32.gmra.mrb[0].mxu0 %v392
        %v496 = vpop.f32.mrb[0].mxu0
        %v497 = vadd.f32 0.0, %v496
        %v498 = vpop.f32.mrb[0].mxu0
        %v499 = vadd.f32 0.0, %v498
        %500 = vmatprep.mubr.f32.mxu0 0.0
        %501 = vmatmul.mubr.f32.gmra.mrb[0].mxu0 %v395
        %v502 = vpop.f32.mrb[0].mxu0
        %v503 = vadd.f32 0.0, %v502
        %v504 = vpop.f32.mrb[0].mxu0
        %v505 = vadd.f32 0.0, %v504
        %506 = vmatprep.mubr.f32.mxu0 0.0
        %507 = vmatmul.mubr.f32.gmra.mrb[0].mxu0 %v398
        %v508 = vpop.f32.mrb[0].mxu0
        %v509 = vadd.f32 0.0, %v508
        %v510 = vpop.f32.mrb[0].mxu0
        %v511 = vadd.f32 0.0, %v510
        %512 = vmatprep.mubr.f32.mxu0 0.0
        %513 = vmatmul.mubr.f32.gmra.mrb[0].mxu0 %v401
        %v514 = vpop.f32.mrb[0].mxu0
        %v515 = vadd.f32 0.0, %v514
        %v516 = vpop.f32.mrb[0].mxu0
        %v517 = vadd.f32 0.0, %v516
        %518 = vmatprep.mubr.f32.mxu0 0.0
        %519 = vmatmul.mubr.f32.gmra.mrb[0].mxu0 %v404
        %v520 = vpop.f32.mrb[0].mxu0
        %v521 = vadd.f32 0.0, %v520
        %v522 = vpop.f32.mrb[0].mxu0
        %v523 = vadd.f32 0.0, %v522
        %524 = vmatprep.mubr.f32.mxu0 0.0
        %525 = vmatmul.mubr.f32.gmra.mrb[0].mxu0 %v407
        %v526 = vpop.f32.mrb[0].mxu0
        %v527 = vadd.f32 0.0, %v526
        %v528 = vpop.f32.mrb[0].mxu0
        %v529 = vadd.f32 0.0, %v528
        %530 = vmatprep.mubr.f32.mxu0 0.0
        %531 = vmatmul.mubr.f32.gmra.mrb[0].mxu0 %v410
        %v532 = vpop.f32.mrb[0].mxu0
        %v533 = vadd.f32 0.0, %v532
        %v534 = vpop.f32.mrb[0].mxu0
        %v535 = vadd.f32 0.0, %v534
        %536 = vmatprep.mubr.f32.mxu0 0.0
        %537 = vmatmul.mubr.f32.gmra.mrb[0].mxu0 %v413
        %v538 = vpop.f32.mrb[0].mxu0
        %v539 = vadd.f32 0.0, %v538
        %v540 = vpop.f32.mrb[0].mxu0
        %v541 = vadd.f32 0.0, %v540
        %542 = vmatprep.mubr.f32.mxu0 0.0
        %543 = vmatmul.mubr.f32.gmra.mrb[0].mxu0 %v416
        %v544 = vpop.f32.mrb[0].mxu0
        %v545 = vadd.f32 0.0, %v544
        %v546 = vpop.f32.mrb[0].mxu0
        %v547 = vadd.f32 0.0, %v546
        %548 = vmatprep.mubr.f32.mxu0 0.0
        %549 = vmatmul.mubr.f32.gmra.mrb[0].mxu0 %v419
        %v550 = vpop.f32.mrb[0].mxu0
        %v551 = vadd.f32 0.0, %v550
        %v552 = vpop.f32.mrb[0].mxu0
        %v553 = vadd.f32 0.0, %v552
        %554 = vmatprep.mubr.f32.mxu0 0.0
        %555 = vmatmul.mubr.f32.gmra.mrb[0].mxu0 %v422
        %v556 = vpop.f32.mrb[0].mxu0
        %v557 = vadd.f32 0.0, %v556
        %v558 = vpop.f32.mrb[0].mxu0
        %v559 = vadd.f32 0.0, %v558
        %560 = vdwg.mxu0
        %v561 = vmul.f32 %v491, %v383
        %v562 = vmul.f32 %v493, %v384
        %v563 = vmul.f32 %v497, %v385
        %v564 = vmul.f32 %v499, %v386
        %v565 = vmul.f32 %v503, %v383
        %v566 = vmul.f32 %v505, %v384
        %v567 = vmul.f32 %v509, %v385
        %v568 = vmul.f32 %v511, %v386
        %v569 = vmul.f32 %v515, %v383
        %v570 = vmul.f32 %v517, %v384
        %v571 = vmul.f32 %v521, %v385
        %v572 = vmul.f32 %v523, %v386
        %v573 = vmul.f32 %v527, %v383
        %v574 = vmul.f32 %v529, %v384
        %v575 = vmul.f32 %v533, %v385
        %v576 = vmul.f32 %v535, %v386
        %v577 = vmul.f32 %v539, %v383
        %v578 = vmul.f32 %v541, %v384
        %v579 = vmul.f32 %v545, %v385
        %v580 = vmul.f32 %v547, %v386
        %v581 = vmul.f32 %v551, %v383
        %v582 = vmul.f32 %v553, %v384
        %v583 = vmul.f32 %v557, %v385
        %v584 = vmul.f32 %v559, %v386
        %v585 = vadd.f32 %v561, %v563
        %v586 = vrot.slane %v585, 4
        %v587 = vadd.f32 %v585, %v586
        %v588 = vrot.slane %v587, 2
        %v589 = vadd.f32 %v587, %v588
        %v590 = vrot.slane %v589, 1
        %v591 = vadd.f32 %v589, %v590
        %v592 = vadd.f32 %v562, %v564
        %v593 = vrot.slane %v592, 4
        %v594 = vadd.f32 %v592, %v593
        %v595 = vrot.slane %v594, 2
        %v596 = vadd.f32 %v594, %v595
        %v597 = vrot.slane %v596, 1
        %v598 = vadd.f32 %v596, %v597
        %v599 = vadd.f32 %v565, %v567
        %v600 = vrot.slane %v599, 4
        %v601 = vadd.f32 %v599, %v600
        %v602 = vrot.slane %v601, 2
        %v603 = vadd.f32 %v601, %v602
        %v604 = vrot.slane %v603, 1
        %v605 = vadd.f32 %v603, %v604
        %v606 = vadd.f32 %v566, %v568
        %v607 = vrot.slane %v606, 4
        %v608 = vadd.f32 %v606, %v607
        %v609 = vrot.slane %v608, 2
        %v610 = vadd.f32 %v608, %v609
        %v611 = vrot.slane %v610, 1
        %v612 = vadd.f32 %v610, %v611
        %v613 = vadd.f32 %v569, %v571
        %v614 = vrot.slane %v613, 4
        %v615 = vadd.f32 %v613, %v614
        %v616 = vrot.slane %v615, 2
        %v617 = vadd.f32 %v615, %v616
        %v618 = vrot.slane %v617, 1
        %v619 = vadd.f32 %v617, %v618
        %v620 = vadd.f32 %v570, %v572
        %v621 = vrot.slane %v620, 4
        %v622 = vadd.f32 %v620, %v621
        %v623 = vrot.slane %v622, 2
        %v624 = vadd.f32 %v622, %v623
        %v625 = vrot.slane %v624, 1
        %v626 = vadd.f32 %v624, %v625
        %v627 = vadd.f32 %v573, %v575
        %v628 = vrot.slane %v627, 4
        %v629 = vadd.f32 %v627, %v628
        %v630 = vrot.slane %v629, 2
        %v631 = vadd.f32 %v629, %v630
        %v632 = vrot.slane %v631, 1
        %v633 = vadd.f32 %v631, %v632
        %v634 = vadd.f32 %v574, %v576
        %v635 = vrot.slane %v634, 4
        %v636 = vadd.f32 %v634, %v635
        %v637 = vrot.slane %v636, 2
        %v638 = vadd.f32 %v636, %v637
        %v639 = vrot.slane %v638, 1
        %v640 = vadd.f32 %v638, %v639
        %v641 = vadd.f32 %v577, %v579
        %v642 = vrot.slane %v641, 4
        %v643 = vadd.f32 %v641, %v642
        %v644 = vrot.slane %v643, 2
        %v645 = vadd.f32 %v643, %v644
        %v646 = vrot.slane %v645, 1
        %v647 = vadd.f32 %v645, %v646
        %v648 = vadd.f32 %v578, %v580
        %v649 = vrot.slane %v648, 4
        %v650 = vadd.f32 %v648, %v649
        %v651 = vrot.slane %v650, 2
        %v652 = vadd.f32 %v650, %v651
        %v653 = vrot.slane %v652, 1
        %v654 = vadd.f32 %v652, %v653
        %v655 = vadd.f32 %v581, %v583
        %v656 = vrot.slane %v655, 4
        %v657 = vadd.f32 %v655, %v656
        %v658 = vrot.slane %v657, 2
        %v659 = vadd.f32 %v657, %v658
        %v660 = vrot.slane %v659, 1
        %v661 = vadd.f32 %v659, %v660
        %v662 = vadd.f32 %v582, %v584
        %v663 = vrot.slane %v662, 4
        %v664 = vadd.f32 %v662, %v663
        %v665 = vrot.slane %v664, 2
        %v666 = vadd.f32 %v664, %v665
        %v667 = vrot.slane %v666, 1
        %v668 = vadd.f32 %v666, %v667
        %v669 = vld [vmem:[%s266] sm:$0x77]
        %v670 = vsub.f32 1.0, %v633
        %v671 = vsub.f32 1.0, %v640
        %v672 = vsub.f32 1.0, %v647
        %v673 = vsub.f32 1.0, %v654
        %v674 = vsub.f32 1.0, %v661
        %v675 = vsub.f32 1.0, %v668
        %v682 = vcombine.low %v670, %v671
        %v683 = vcombine.low %v672, %v673
        %v684 = vcombine.low %v674, %v675
        %v685 = vrot.slane %v683, 7
        %vm686 = vcmask 1041409
        %v687 = vsel %vm686, %v685, %v682
        %vm688 = vcmask 1045509
        %v689 = vsel %vm688, %v685, %v687
        %v690 = vrot.slane %v684, 6
        %vm691 = vcmask 1042434
        %v692 = vsel %vm691, %v690, %v689
        %vm693 = vcmask 1046534
        %v694 = vsel %vm693, %v690, %v692
        %v696 = vmul.f32 %v669, %v694
        %v698 = vcombine.high %v696, %v696
        %v699 = vrot.slane %v696, 1
        %v700 = vrot.slane %v698, 1
        %v701 = vrot.slane %v696, 2
        %v702 = vrot.slane %v698, 2
        %v709 = vadd.f32 %v591, %v696
        %v710 = vadd.f32 %v598, %v698
        %v711 = vadd.f32 %v605, %v699
        %v712 = vadd.f32 %v612, %v700
        %v713 = vadd.f32 %v619, %v701
        %v714 = vadd.f32 %v626, %v702
        %v721 = vcombine.low %v709, %v710
        %v722 = vcombine.low %v711, %v712
        %v723 = vcombine.low %v713, %v714
        %v724 = vrot.slane %v722, 7
        %v725 = vsel %vm686, %v724, %v721
        %v726 = vsel %vm688, %v724, %v725
        %v727 = vrot.slane %v723, 6
        %v728 = vsel %vm691, %v727, %v726
        %v729 = vsel %vm693, %v727, %v728
        %731 = vst [vmem:[%s278] sm:$0x77] %v729
        %s732 = smul.u32 %s20, 2
        %s733 = sadd.s32 %s732, 1
        %s734 = smul.u32 %s733, 6
        %s735 = sld [smem:[#allocation2 + %s734]]
        %s736 = sadd.s32 %s734, 1
        %s737 = sld [smem:[#allocation2 + %s736]]
        %s738 = sadd.s32 %s734, 2
        %s739 = sld [smem:[#allocation2 + %s738]]
        %s740 = sadd.s32 %s734, 3
        %s741 = sld [smem:[#allocation2 + %s740]]
        %s742 = sadd.s32 %s734, 4
        %s743 = sld [smem:[#allocation2 + %s742]]
        %s744 = sadd.s32 %s734, 5
        %s745 = sld [smem:[#allocation2 + %s744]]
        %v746 = vstv %s735
        %v747 = vmul.f32 %v746, %v281
        %v748 = vstv %s737
        %v749 = vmul.f32 %v748, %v283
        %v750 = vadd.f32 %v747, %v749
        %v751 = vstv %s739
        %v752 = vadd.f32 %v750, %v751
        %v753 = vstv %s741
        %v754 = vmul.f32 %v753, %v281
        %v755 = vstv %s743
        %v756 = vmul.f32 %v755, %v283
        %v757 = vadd.f32 %v754, %v756
        %v758 = vstv %s745
        %v759 = vadd.f32 %v757, %v758
        %v760 = vadd.f32 %v752, 1.0
        %v761 = vmul.f32 %v760, 8.0
        %v762 = vsub.f32 %v761, 0.5
        %v763 = vadd.f32 %v759, 1.0
        %v764 = vmul.f32 %v763, 8.0
        %v765 = vsub.f32 %v764, 0.5
        %v767 = vlaneseq
        %v768 = vshrl.u32 %v767, 7
        %v769 = vsub.s32 0, %v768
        %v770 = vrot.slane %v762, %v769
        %v771 = vlaneseq
        %v772 = vshrl.u32 %v771, 7
        %v773 = vsub.s32 1, %v772
        %v774 = vrot.slane %v762, %v773
        %v777 = vsub.f32 %v287, %v770
        %v778 = vsub.f32 %v287, %v774
        %v779 = vsub.f32 %v288, %v770
        %v780 = vsub.f32 %v288, %v774
        %v781 = vand.u32 2147483647, %v777
        %v782 = vand.u32 2147483647, %v778
        %v783 = vand.u32 2147483647, %v779
        %v784 = vand.u32 2147483647, %v780
        %v785 = vsub.f32 1.0, %v781
        %v786 = vsub.f32 1.0, %v782
        %v787 = vsub.f32 1.0, %v783
        %v788 = vsub.f32 1.0, %v784
        %v789 = vmax.f32 %v785, 0.0
        %v790 = vmax.f32 %v786, 0.0
        %v791 = vmax.f32 %v787, 0.0
        %v792 = vmax.f32 %v788, 0.0
        %v794 = vlaneseq
        %v795 = vshrl.u32 %v794, 7
        %v796 = vsub.s32 0, %v795
        %v797 = vrot.slane %v765, %v796
        %v798 = vlaneseq
        %v799 = vshrl.u32 %v798, 7
        %v800 = vsub.s32 1, %v799
        %v801 = vrot.slane %v765, %v800
        %v804 = vsub.f32 %v287, %v797
        %v805 = vsub.f32 %v287, %v801
        %v806 = vsub.f32 %v288, %v797
        %v807 = vsub.f32 %v288, %v801
        %v808 = vand.u32 2147483647, %v804
        %v809 = vand.u32 2147483647, %v805
        %v810 = vand.u32 2147483647, %v806
        %v811 = vand.u32 2147483647, %v807
        %v812 = vsub.f32 1.0, %v808
        %v813 = vsub.f32 1.0, %v809
        %v814 = vsub.f32 1.0, %v810
        %v815 = vsub.f32 1.0, %v811
        %v816 = vmax.f32 %v812, 0.0
        %v817 = vmax.f32 %v813, 0.0
        %v818 = vmax.f32 %v814, 0.0
        %v819 = vmax.f32 %v815, 0.0
        %820 = vmatprep.subr.mxu0 %v790
        %821 = vmatpush1.msra.mxu0 %v789
        %822 = vmatprep.subr.mxu0 %v792
        %823 = vmatpush1.msra.mxu0 %v791
        %824 = vmatprep.subr.mxu0 0.0
        %825 = vmatpush1.msra.mxu0 0.0
        %826 = vmatprep.subr.mxu0 0.0
        %827 = vmatpush1.msra.mxu0 0.0
        %828 = vmatprep.subr.mxu0 0.0
        %829 = vmatpush1.msra.mxu0 0.0
        %830 = vmatprep.subr.mxu0 0.0
        %831 = vmatpush1.msra.mxu0 0.0
        %832 = vmatprep.subr.mxu0 0.0
        %833 = vmatpush1.msra.mxu0 0.0
        %834 = vmatprep.subr.mxu0 0.0
        %835 = vmatpush1.msra.mxu0 0.0
        %836 = vmatprep.subr.mxu0 0.0
        %837 = vmatpush1.msra.mxu0 0.0
        %838 = vmatprep.subr.mxu0 0.0
        %839 = vmatpush1.msra.mxu0 0.0
        %840 = vmatprep.subr.mxu0 0.0
        %841 = vmatpush1.msra.mxu0 0.0
        %842 = vmatprep.subr.mxu0 0.0
        %843 = vmatpush1.msra.mxu0 0.0
        %844 = vmatprep.subr.mxu0 0.0
        %845 = vmatpush1.msra.mxu0 0.0
        %846 = vmatprep.subr.mxu0 0.0
        %847 = vmatpush1.msra.mxu0 0.0
        %848 = vmatprep.subr.mxu0 0.0
        %849 = vmatpush1.msra.mxu0 0.0
        %850 = vmatprep.subr.mxu0 0.0
        %851 = vmatpush1.msra.mxu0 0.0
        %852 = vmatprep.subr.mxu0 0.0
        %853 = vmatpush1.msra.mxu0 0.0
        %854 = vmatprep.subr.mxu0 0.0
        %855 = vmatpush1.msra.mxu0 0.0
        %856 = vmatprep.subr.mxu0 0.0
        %857 = vmatpush1.msra.mxu0 0.0
        %858 = vmatprep.subr.mxu0 0.0
        %859 = vmatpush1.msra.mxu0 0.0
        %860 = vmatprep.subr.mxu0 0.0
        %861 = vmatpush1.msra.mxu0 0.0
        %862 = vmatprep.subr.mxu0 0.0
        %863 = vmatpush1.msra.mxu0 0.0
        %864 = vmatprep.subr.mxu0 0.0
        %865 = vmatpush1.msra.mxu0 0.0
        %866 = vmatprep.subr.mxu0 0.0
        %867 = vmatpush1.msra.mxu0 0.0
        %868 = vmatprep.subr.mxu0 0.0
        %869 = vmatpush1.msra.mxu0 0.0
        %870 = vmatprep.subr.mxu0 0.0
        %871 = vmatpush1.msra.mxu0 0.0
        %872 = vmatprep.subr.mxu0 0.0
        %873 = vmatpush1.msra.mxu0 0.0
        %874 = vmatprep.subr.mxu0 0.0
        %875 = vmatpush1.msra.mxu0 0.0
        %876 = vmatprep.subr.mxu0 0.0
        %877 = vmatpush1.msra.mxu0 0.0
        %878 = vmatprep.subr.mxu0 0.0
        %879 = vmatpush1.msra.mxu0 0.0
        %880 = vmatprep.subr.mxu0 0.0
        %881 = vmatpush1.msra.mxu0 0.0
        %882 = vmatprep.subr.mxu0 0.0
        %883 = vmatpush1.msra.mxu0 0.0
        %884 = vmatprep.mubr.f32.mxu0 0.0
        %885 = vmatmul.mubr.f32.gmra.mrb[0].mxu0 %v389
        %v886 = vpop.f32.mrb[0].mxu0
        %v887 = vadd.f32 0.0, %v886
        %v888 = vpop.f32.mrb[0].mxu0
        %v889 = vadd.f32 0.0, %v888
        %890 = vmatprep.mubr.f32.mxu0 0.0
        %891 = vmatmul.mubr.f32.gmra.mrb[0].mxu0 %v392
        %v892 = vpop.f32.mrb[0].mxu0
        %v893 = vadd.f32 0.0, %v892
        %v894 = vpop.f32.mrb[0].mxu0
        %v895 = vadd.f32 0.0, %v894
        %896 = vmatprep.mubr.f32.mxu0 0.0
        %897 = vmatmul.mubr.f32.gmra.mrb[0].mxu0 %v395
        %v898 = vpop.f32.mrb[0].mxu0
        %v899 = vadd.f32 0.0, %v898
        %v900 = vpop.f32.mrb[0].mxu0
        %v901 = vadd.f32 0.0, %v900
        %902 = vmatprep.mubr.f32.mxu0 0.0
        %903 = vmatmul.mubr.f32.gmra.mrb[0].mxu0 %v398
        %v904 = vpop.f32.mrb[0].mxu0
        %v905 = vadd.f32 0.0, %v904
        %v906 = vpop.f32.mrb[0].mxu0
        %v907 = vadd.f32 0.0, %v906
        %908 = vmatprep.mubr.f32.mxu0 0.0
        %909 = vmatmul.mubr.f32.gmra.mrb[0].mxu0 %v401
        %v910 = vpop.f32.mrb[0].mxu0
        %v911 = vadd.f32 0.0, %v910
        %v912 = vpop.f32.mrb[0].mxu0
        %v913 = vadd.f32 0.0, %v912
        %914 = vmatprep.mubr.f32.mxu0 0.0
        %915 = vmatmul.mubr.f32.gmra.mrb[0].mxu0 %v404
        %v916 = vpop.f32.mrb[0].mxu0
        %v917 = vadd.f32 0.0, %v916
        %v918 = vpop.f32.mrb[0].mxu0
        %v919 = vadd.f32 0.0, %v918
        %920 = vmatprep.mubr.f32.mxu0 0.0
        %921 = vmatmul.mubr.f32.gmra.mrb[0].mxu0 %v407
        %v922 = vpop.f32.mrb[0].mxu0
        %v923 = vadd.f32 0.0, %v922
        %v924 = vpop.f32.mrb[0].mxu0
        %v925 = vadd.f32 0.0, %v924
        %926 = vmatprep.mubr.f32.mxu0 0.0
        %927 = vmatmul.mubr.f32.gmra.mrb[0].mxu0 %v410
        %v928 = vpop.f32.mrb[0].mxu0
        %v929 = vadd.f32 0.0, %v928
        %v930 = vpop.f32.mrb[0].mxu0
        %v931 = vadd.f32 0.0, %v930
        %932 = vmatprep.mubr.f32.mxu0 0.0
        %933 = vmatmul.mubr.f32.gmra.mrb[0].mxu0 %v413
        %v934 = vpop.f32.mrb[0].mxu0
        %v935 = vadd.f32 0.0, %v934
        %v936 = vpop.f32.mrb[0].mxu0
        %v937 = vadd.f32 0.0, %v936
        %938 = vmatprep.mubr.f32.mxu0 0.0
        %939 = vmatmul.mubr.f32.gmra.mrb[0].mxu0 %v416
        %v940 = vpop.f32.mrb[0].mxu0
        %v941 = vadd.f32 0.0, %v940
        %v942 = vpop.f32.mrb[0].mxu0
        %v943 = vadd.f32 0.0, %v942
        %944 = vmatprep.mubr.f32.mxu0 0.0
        %945 = vmatmul.mubr.f32.gmra.mrb[0].mxu0 %v419
        %v946 = vpop.f32.mrb[0].mxu0
        %v947 = vadd.f32 0.0, %v946
        %v948 = vpop.f32.mrb[0].mxu0
        %v949 = vadd.f32 0.0, %v948
        %950 = vmatprep.mubr.f32.mxu0 0.0
        %951 = vmatmul.mubr.f32.gmra.mrb[0].mxu0 %v422
        %v952 = vpop.f32.mrb[0].mxu0
        %v953 = vadd.f32 0.0, %v952
        %v954 = vpop.f32.mrb[0].mxu0
        %v955 = vadd.f32 0.0, %v954
        %956 = vdwg.mxu0
        %v957 = vmul.f32 %v887, %v816
        %v958 = vmul.f32 %v889, %v817
        %v959 = vmul.f32 %v893, %v818
        %v960 = vmul.f32 %v895, %v819
        %v961 = vmul.f32 %v899, %v816
        %v962 = vmul.f32 %v901, %v817
        %v963 = vmul.f32 %v905, %v818
        %v964 = vmul.f32 %v907, %v819
        %v965 = vmul.f32 %v911, %v816
        %v966 = vmul.f32 %v913, %v817
        %v967 = vmul.f32 %v917, %v818
        %v968 = vmul.f32 %v919, %v819
        %v969 = vmul.f32 %v923, %v816
        %v970 = vmul.f32 %v925, %v817
        %v971 = vmul.f32 %v929, %v818
        %v972 = vmul.f32 %v931, %v819
        %v973 = vmul.f32 %v935, %v816
        %v974 = vmul.f32 %v937, %v817
        %v975 = vmul.f32 %v941, %v818
        %v976 = vmul.f32 %v943, %v819
        %v977 = vmul.f32 %v947, %v816
        %v978 = vmul.f32 %v949, %v817
        %v979 = vmul.f32 %v953, %v818
        %v980 = vmul.f32 %v955, %v819
        %v981 = vadd.f32 %v957, %v959
        %v982 = vrot.slane %v981, 4
        %v983 = vadd.f32 %v981, %v982
        %v984 = vrot.slane %v983, 2
        %v985 = vadd.f32 %v983, %v984
        %v986 = vrot.slane %v985, 1
        %v987 = vadd.f32 %v985, %v986
        %v988 = vadd.f32 %v958, %v960
        %v989 = vrot.slane %v988, 4
        %v990 = vadd.f32 %v988, %v989
        %v991 = vrot.slane %v990, 2
        %v992 = vadd.f32 %v990, %v991
        %v993 = vrot.slane %v992, 1
        %v994 = vadd.f32 %v992, %v993
        %v995 = vadd.f32 %v961, %v963
        %v996 = vrot.slane %v995, 4
        %v997 = vadd.f32 %v995, %v996
        %v998 = vrot.slane %v997, 2
        %v999 = vadd.f32 %v997, %v998
        %v1000 = vrot.slane %v999, 1
        %v1001 = vadd.f32 %v999, %v1000
        %v1002 = vadd.f32 %v962, %v964
        %v1003 = vrot.slane %v1002, 4
        %v1004 = vadd.f32 %v1002, %v1003
        %v1005 = vrot.slane %v1004, 2
        %v1006 = vadd.f32 %v1004, %v1005
        %v1007 = vrot.slane %v1006, 1
        %v1008 = vadd.f32 %v1006, %v1007
        %v1009 = vadd.f32 %v965, %v967
        %v1010 = vrot.slane %v1009, 4
        %v1011 = vadd.f32 %v1009, %v1010
        %v1012 = vrot.slane %v1011, 2
        %v1013 = vadd.f32 %v1011, %v1012
        %v1014 = vrot.slane %v1013, 1
        %v1015 = vadd.f32 %v1013, %v1014
        %v1016 = vadd.f32 %v966, %v968
        %v1017 = vrot.slane %v1016, 4
        %v1018 = vadd.f32 %v1016, %v1017
        %v1019 = vrot.slane %v1018, 2
        %v1020 = vadd.f32 %v1018, %v1019
        %v1021 = vrot.slane %v1020, 1
        %v1022 = vadd.f32 %v1020, %v1021
        %v1023 = vadd.f32 %v969, %v971
        %v1024 = vrot.slane %v1023, 4
        %v1025 = vadd.f32 %v1023, %v1024
        %v1026 = vrot.slane %v1025, 2
        %v1027 = vadd.f32 %v1025, %v1026
        %v1028 = vrot.slane %v1027, 1
        %v1029 = vadd.f32 %v1027, %v1028
        %v1030 = vadd.f32 %v970, %v972
        %v1031 = vrot.slane %v1030, 4
        %v1032 = vadd.f32 %v1030, %v1031
        %v1033 = vrot.slane %v1032, 2
        %v1034 = vadd.f32 %v1032, %v1033
        %v1035 = vrot.slane %v1034, 1
        %v1036 = vadd.f32 %v1034, %v1035
        %v1037 = vadd.f32 %v973, %v975
        %v1038 = vrot.slane %v1037, 4
        %v1039 = vadd.f32 %v1037, %v1038
        %v1040 = vrot.slane %v1039, 2
        %v1041 = vadd.f32 %v1039, %v1040
        %v1042 = vrot.slane %v1041, 1
        %v1043 = vadd.f32 %v1041, %v1042
        %v1044 = vadd.f32 %v974, %v976
        %v1045 = vrot.slane %v1044, 4
        %v1046 = vadd.f32 %v1044, %v1045
        %v1047 = vrot.slane %v1046, 2
        %v1048 = vadd.f32 %v1046, %v1047
        %v1049 = vrot.slane %v1048, 1
        %v1050 = vadd.f32 %v1048, %v1049
        %v1051 = vadd.f32 %v977, %v979
        %v1052 = vrot.slane %v1051, 4
        %v1053 = vadd.f32 %v1051, %v1052
        %v1054 = vrot.slane %v1053, 2
        %v1055 = vadd.f32 %v1053, %v1054
        %v1056 = vrot.slane %v1055, 1
        %v1057 = vadd.f32 %v1055, %v1056
        %v1058 = vadd.f32 %v978, %v980
        %v1059 = vrot.slane %v1058, 4
        %v1060 = vadd.f32 %v1058, %v1059
        %v1061 = vrot.slane %v1060, 2
        %v1062 = vadd.f32 %v1060, %v1061
        %v1063 = vrot.slane %v1062, 1
        %v1064 = vadd.f32 %v1062, %v1063
        %s1065 = scalar_lea.vmem %s266, 8
        %v1066 = vld [vmem:[%s1065] sm:$0x77]
        %v1067 = vsub.f32 1.0, %v1029
        %v1068 = vsub.f32 1.0, %v1036
        %v1069 = vsub.f32 1.0, %v1043
        %v1070 = vsub.f32 1.0, %v1050
        %v1071 = vsub.f32 1.0, %v1057
        %v1072 = vsub.f32 1.0, %v1064
        %v1079 = vcombine.low %v1067, %v1068
        %v1080 = vcombine.low %v1069, %v1070
        %v1081 = vcombine.low %v1071, %v1072
        %v1082 = vrot.slane %v1080, 7
        %v1083 = vsel %vm686, %v1082, %v1079
        %v1084 = vsel %vm688, %v1082, %v1083
        %v1085 = vrot.slane %v1081, 6
        %v1086 = vsel %vm691, %v1085, %v1084
        %v1087 = vsel %vm693, %v1085, %v1086
        %v1089 = vmul.f32 %v1066, %v1087
        %v1091 = vcombine.high %v1089, %v1089
        %v1092 = vrot.slane %v1089, 1
        %v1093 = vrot.slane %v1091, 1
        %v1094 = vrot.slane %v1089, 2
        %v1095 = vrot.slane %v1091, 2
        %v1102 = vadd.f32 %v987, %v1089
        %v1103 = vadd.f32 %v994, %v1091
        %v1104 = vadd.f32 %v1001, %v1092
        %v1105 = vadd.f32 %v1008, %v1093
        %v1106 = vadd.f32 %v1015, %v1094
        %v1107 = vadd.f32 %v1022, %v1095
        %v1114 = vcombine.low %v1102, %v1103
        %v1115 = vcombine.low %v1104, %v1105
        %v1116 = vcombine.low %v1106, %v1107
        %v1117 = vrot.slane %v1115, 7
        %v1118 = vsel %vm686, %v1117, %v1114
        %v1119 = vsel %vm688, %v1117, %v1118
        %v1120 = vrot.slane %v1116, 6
        %v1121 = vsel %vm691, %v1120, %v1119
        %v1122 = vsel %vm693, %v1120, %v1121
        %s1124 = scalar_lea.vmem %s278, 8
        %1125 = vst [vmem:[%s1124] sm:$0x77] %v1122
        %s1126 = smul.u32 2, %s20
        %s1127 = smul.u32 2, %s21
        %p1128 = scmp.lt.s32.totalorder %s1126, 3
        %s1129 = scalar_select %p1128, %s1126, 3
        %p1130 = scmp.lt.s32.totalorder %s1127, 1
        %s1131 = scalar_select %p1130, %s1127, 1
        %s1132 = smul.addr %s1129, 2
        %s1133 = sadd.s32 %s1131, %s1132
        %s1134 = smul.addr %s1133, 4
        %s1135 = scalar_lea.vmem %s4, %s1134
        // Predicated region
        $region41: #{tpu_custom_call.1} parent=35 // pred_check
          %p1136 = pneg %p144
        $region42: #{tpu_custom_call.1} parent=35 // pred_check_branch
          %1138 = sbr.rel (%p1136) target = $region44
        $region43: #{tpu_custom_call.1} parent=35 // pred_region
          %s1139 = smul.u32 2, %s20
          %s1140 = smul.u32 2, %s21
        $region44: #{tpu_custom_call.1} parent=35 // pred_fallthru
          _
      $region36: #{tpu_custom_call.1} parent=5 // pred_fallthru
        _
      %p1141 = scmp.le.s32.totalorder 2, %s11
      // Predicated region
      $region45: #{tpu_custom_call.1} parent=5 // pred_check
        %p1142 = pneg %p1141
      $region46: #{tpu_custom_call.1} parent=5 // pred_check_branch
        %1144 = sbr.rel (%p1142) target = $region48
      $region47: #{tpu_custom_call.1} parent=5 // pred_region
        %s1145 = ssub.s32 %s11, 2
        // Predicated region
        $region49: #{tpu_custom_call.1} parent=47 // pred_check
          %p1146 = pneg %p150
        $region50: #{tpu_custom_call.1} parent=47 // pred_check_branch
          %1148 = sbr.rel (%p1146) target = $region52
        $region51: #{tpu_custom_call.1} parent=47 // pred_region
          %s1149 = smul.u32 2, %s22
          %s1150 = smul.u32 2, %s23
          %p1151 = scmp.lt.s32.totalorder %s1149, 3
          %s1152 = scalar_select %p1151, %s1149, 3
          %p1153 = scmp.lt.s32.totalorder %s1150, 1
          %s1154 = scalar_select %p1153, %s1150, 1
          %s1155 = smul.addr %s1152, 2
          %s1156 = sadd.s32 %s1154, %s1155
          %s1157 = smul.addr %s1156, 4
          %s1158 = scalar_lea.vmem %s4, %s1157
        $region52: #{tpu_custom_call.1} parent=47 // pred_fallthru
          _
      $region48: #{tpu_custom_call.1} parent=5 // pred_fallthru
        _
    $region6: #{tpu_custom_call.1} parent=1 // loop_footer
      %s15 = sadd.s32 1, %s11
    $region7: #{tpu_custom_call.1} parent=1 // loop_footer_branch
      %10 = sbr.rel target = $region3
    $region8: #{tpu_custom_call.1} parent=1 // loop_exit
      _
    %1159 = vsyncpa [#allocation3], 1
    %s1160 = scalar_lea.sflag [#allocation3], 1
    %1161 = vsyncpa %s1160, 1

</llo_original>
